<compile_context>
chip_gen: v5e
topology: v5e:2x2
jax: 0.10.0
libtpu: 0.0.40
codegen_flags: <defaults>
</compile_context>

<pallas_src>
import functools

import jax
import jax.numpy as jnp
from jax.experimental import pallas as pl
from jax.experimental.pallas import tpu as pltpu


def centercrop(image, w, h):
    """JAX equivalent of the PyTorch helper (NCHW)."""
    nt, ct, ht, wt = image.shape
    padw, padh = (wt - w) // 2, (ht - h) // 2
    if padw > 0 and padh > 0:
        image = image[:, :, padh:ht - padh, padw:wt - padw]
    return image


def _focal_loss_kernel(gamma_int, gamma_f, hw, tile_m, needs_mask,
                       yp_ref, yt_ref, w_ref, out_ref):
    """One (C, TM) pixel tile of one batch element -> one scalar partial.

    out_ref: (1, 8, 128) lane-dense partials block for this (batch, tile).
    """
    yp = yp_ref[...].astype(jnp.float32)          # (C, TM)
    yt = yt_ref[...].astype(jnp.float32)          # (C, TM)
    wt = w_ref[...].astype(jnp.float32)           # (C, TM)

    # numerically-stable softmax / log-softmax over the channel (sublane) axis
    m = jnp.max(yp, axis=0, keepdims=True)        # (1, TM)
    z = yp - m
    e = jnp.exp(z)
    s = jnp.sum(e, axis=0, keepdims=True)         # (1, TM)
    inv_s = pl.reciprocal(s, approx=False)        # 1-row reciprocal (cheap)
    log_sm = z - jnp.log(s)                       # log_softmax(y_pred, dim=C)
    sm = e * inv_s                                # softmax(y_pred, dim=C)

    d = 1.0 - sm
    if gamma_int is not None:
        if gamma_int == 0:
            fweight = jnp.ones_like(d)
        else:
            fweight = d
            for _ in range(gamma_int - 1):
                fweight = fweight * d
    else:
        fweight = d ** gamma_f

    contrib = wt * fweight * log_sm * yt          # (C, TM)

    if needs_mask:
        # Ragged last tile: a single select on the final contribution both
        # zeroes the padded lanes and stops NaN/Inf propagation from the
        # (undefined) padded region.
        i = pl.program_id(1)
        remaining = hw - i * tile_m
        lane = jax.lax.broadcasted_iota(jnp.int32, contrib.shape, 1)
        contrib = jnp.where(lane < remaining, contrib, 0.0)

    # channel (sublane/XLU) reduce first, then one lane reduce per tile
    row = jnp.sum(contrib, axis=0, keepdims=True)   # (1, TM)
    total = jnp.sum(row)                            # scalar partial
    out_ref[...] = jnp.broadcast_to(total, out_ref.shape)


def weighted_mce_focal_loss(y_pred, y_true, weight, gamma=2.0, tile_m=None):
    """y_pred, y_true, weight: NCHW arrays. Returns a scalar loss."""
    n, c, h, w = y_pred.shape
    y_true = centercrop(y_true, w, h)
    weight = centercrop(weight, w, h)

    hw = h * w
    total_m = n * hw  # pixels the mean runs over

    # free reshape when no crop happened (contiguous NCHW -> (N, C, H*W))
    yp = y_pred.reshape(n, c, hw)
    yt = y_true.reshape(n, c, hw)
    wt = weight.reshape(n, c, hw)

    padded_hw = pl.cdiv(hw, 128) * 128

    if tile_m is None:
        # ~1 MiB of f32 per input stream per tile: big enough to amortize the
        # per-grid-step overhead, small enough that the double-buffered inputs
        # plus elementwise temporaries stay comfortably inside scoped VMEM on
        # every generation (v5e/v6e/v7x).
        tile_m = max(128, ((1 << 20) // (4 * c)) // 128 * 128)
    tm = min(int(tile_m), padded_hw)
    tm = max(128, (tm // 128) * 128)
    num_tiles = pl.cdiv(hw, tm)
    needs_mask = (hw % tm) != 0

    tile_bytes = c * tm * 4
    # 3 streams x 2 buffers + headroom for elementwise temporaries.
    # >= 32 MiB (raises v5e's 16 MiB scoped default), <= 56 MiB (under v7x's
    # 64 MiB physical VMEM).
    vmem_limit = int(min(max(16 * tile_bytes + (2 << 20), 32 << 20), 56 << 20))

    g = float(gamma)
    gamma_int = int(g) if (g == int(g) and 0 <= int(g) <= 8) else None

    kernel = functools.partial(
        _focal_loss_kernel, gamma_int, g, hw, tm, needs_mask)

    partials = pl.pallas_call(
        kernel,
        out_shape=jax.ShapeDtypeStruct((n, num_tiles, 8, 128), jnp.float32),
        grid_spec=pltpu.PrefetchScalarGridSpec(
            num_scalar_prefetch=0,
            grid=(n, num_tiles),
            in_specs=[
                pl.BlockSpec((None, c, tm), lambda b, i: (b, 0, i)),
                pl.BlockSpec((None, c, tm), lambda b, i: (b, 0, i)),
                pl.BlockSpec((None, c, tm), lambda b, i: (b, 0, i)),
            ],
            out_specs=pl.BlockSpec((None, 1, 8, 128),
                                   lambda b, i: (b, i, 0, 0)),
        ),
        compiler_params=pltpu.CompilerParams(
            dimension_semantics=("parallel", "parallel"),
            vmem_limit_bytes=vmem_limit),
    )(yp, yt, wt)

    # loss = -mean over the N*H*W pixels of the per-pixel channel sum
    return -jnp.sum(partials[:, :, 0, 0]) / total_m


def _reference_loss(y_pred, y_true, weight, gamma=2.0):
    """Pure-JAX reference matching the PyTorch forward."""
    n, c, h, w = y_pred.shape
    y_true = centercrop(y_true, w, h)
    weight = centercrop(weight, w, h)
    y_pred_log = jax.nn.log_softmax(y_pred, axis=1)
    fweight = (1.0 - jax.nn.softmax(y_pred, axis=1)) ** gamma
    weight = weight * fweight
    logpy = jnp.sum(weight * y_pred_log * y_true, axis=1)
    return -jnp.mean(logpy)


if __name__ == "__main__":
    key = jax.random.PRNGKey(0)
    k1, k2, k3 = jax.random.split(key, 3)

    N, C, H, W = 2, 4, 16, 16
    y_pred = jax.random.normal(k1, (N, C, H, W), dtype=jnp.float32)
    # one-hot-ish targets (class masks) and positive per-pixel weights
    labels = jax.random.randint(k2, (N, H, W), 0, C)
    y_true = jax.nn.one_hot(labels, C, axis=1, dtype=jnp.float32)
    weight = jax.random.uniform(k3, (N, C, H, W), dtype=jnp.float32) + 0.5

    loss = weighted_mce_focal_loss(y_pred, y_true, weight, gamma=2.0)
    loss = jax.block_until_ready(loss)

    ref = _reference_loss(y_pred, y_true, weight, gamma=2.0)
    assert jnp.allclose(loss, ref, rtol=1e-5, atol=1e-5), (loss, ref)

    print("KERNEL_OK")
</pallas_src>

<mosaic_0001>
module attributes {stable_mosaic.version = 11 : i64} {
  func.func @_focal_loss_kernel(%arg0: i32, %arg1: i32, %arg2: memref<1x4x256xf32, #tpu.memory_space<vmem>>, %arg3: memref<1x4x256xf32, #tpu.memory_space<vmem>>, %arg4: memref<1x4x256xf32, #tpu.memory_space<vmem>>, %arg5: memref<1x1x8x128xf32, #tpu.memory_space<vmem>>) attributes {dimension_semantics = [#tpu.dimension_semantics<parallel>, #tpu.dimension_semantics<parallel>], iteration_bounds = array<i64: 2, 1>, scalar_prefetch = 0 : i64, scratch_operands = 0 : i64, tpu.core_type = #tpu.core_type<tc>, window_params = [{transform_indices = @transform_0, window_bounds = array<i64: 1, 4, 256>}, {transform_indices = @transform_1, window_bounds = array<i64: 1, 4, 256>}, {transform_indices = @transform_2, window_bounds = array<i64: 1, 4, 256>}, {transform_indices = @transform_3, window_bounds = array<i64: 1, 1, 8, 128>}]} {
    %c0 = arith.constant 0 : index
    %c0_0 = arith.constant 0 : index
    %c0_1 = arith.constant 0 : index
    %0 = vector.load %arg2[%c0, %c0_0, %c0_1] : memref<1x4x256xf32, #tpu.memory_space<vmem>>, vector<1x4x256xf32>
    %1 = vector.shape_cast %0 : vector<1x4x256xf32> to vector<4x256xf32>
    %c0_2 = arith.constant 0 : index
    %c0_3 = arith.constant 0 : index
    %c0_4 = arith.constant 0 : index
    %2 = vector.load %arg3[%c0_2, %c0_3, %c0_4] : memref<1x4x256xf32, #tpu.memory_space<vmem>>, vector<1x4x256xf32>
    %3 = vector.shape_cast %2 : vector<1x4x256xf32> to vector<4x256xf32>
    %c0_5 = arith.constant 0 : index
    %c0_6 = arith.constant 0 : index
    %c0_7 = arith.constant 0 : index
    %4 = vector.load %arg4[%c0_5, %c0_6, %c0_7] : memref<1x4x256xf32, #tpu.memory_space<vmem>>, vector<1x4x256xf32>
    %5 = vector.shape_cast %4 : vector<1x4x256xf32> to vector<4x256xf32>
    %cst = arith.constant dense<0xFF800000> : vector<256xf32>
    %6 = vector.multi_reduction <maximumf>, %1, %cst [0] : vector<4x256xf32> to vector<256xf32>
    %7 = vector.shape_cast %6 : vector<256xf32> to vector<1x256xf32>
    %8 = vector.broadcast %7 : vector<1x256xf32> to vector<4x256xf32>
    %9 = arith.subf %1, %8 : vector<4x256xf32>
    %10 = math.exp %9 : vector<4x256xf32>
    %cst_8 = arith.constant dense<0.000000e+00> : vector<256xf32>
    %11 = vector.multi_reduction <add>, %10, %cst_8 [0] : vector<4x256xf32> to vector<256xf32>
    %12 = vector.shape_cast %11 : vector<256xf32> to vector<1x256xf32>
    %13 = tpu.reciprocal %12 : vector<1x256xf32> -> vector<1x256xf32>
    %14 = math.log %12 : vector<1x256xf32>
    %15 = vector.broadcast %14 : vector<1x256xf32> to vector<4x256xf32>
    %16 = arith.subf %9, %15 : vector<4x256xf32>
    %17 = vector.broadcast %13 : vector<1x256xf32> to vector<4x256xf32>
    %18 = arith.mulf %10, %17 : vector<4x256xf32>
    %cst_9 = arith.constant 1.000000e+00 : f32
    %19 = vector.broadcast %cst_9 : f32 to vector<4x256xf32>
    %20 = arith.subf %19, %18 : vector<4x256xf32>
    %21 = arith.mulf %20, %20 : vector<4x256xf32>
    %22 = arith.mulf %5, %21 : vector<4x256xf32>
    %23 = arith.mulf %22, %16 : vector<4x256xf32>
    %24 = arith.mulf %23, %3 : vector<4x256xf32>
    %cst_10 = arith.constant dense<0.000000e+00> : vector<256xf32>
    %25 = vector.multi_reduction <add>, %24, %cst_10 [0] : vector<4x256xf32> to vector<256xf32>
    %26 = vector.shape_cast %25 : vector<256xf32> to vector<1x256xf32>
    %27 = vector.shape_cast %26 : vector<1x256xf32> to vector<1x1x256xf32>
    %cst_11 = arith.constant dense<0.000000e+00> : vector<1xf32>
    %28 = vector.multi_reduction <add>, %27, %cst_11 [1, 2] : vector<1x1x256xf32> to vector<1xf32>
    %29 = vector.shape_cast %28 : vector<1xf32> to vector<1x1x1xf32>
    %30 = vector.extract %29[0, 0, 0] : f32 from vector<1x1x1xf32>
    %31 = vector.broadcast %30 : f32 to vector<1x8x128xf32>
    %c0_12 = arith.constant 0 : index
    %c0_13 = arith.constant 0 : index
    %c0_14 = arith.constant 0 : index
    %c0_15 = arith.constant 0 : index
    %32 = vector.load %arg5[%c0_12, %c0_13, %c0_14, %c0_15] : memref<1x1x8x128xf32, #tpu.memory_space<vmem>>, vector<1x1x8x128xf32>
    %33 = vector.shape_cast %32 : vector<1x1x8x128xf32> to vector<1x8x128xf32>
    %34 = vector.shape_cast %31 : vector<1x8x128xf32> to vector<1x1x8x128xf32>
    tpu.vector_store %arg5[%c0_12, %c0_13, %c0_14, %c0_15], %34 {strides = array<i32>} : memref<1x1x8x128xf32, #tpu.memory_space<vmem>>, vector<1x1x8x128xf32>,
    return
  }
  func.func @transform_0(%arg0: i32, %arg1: i32) -> (i32, i32, i32) {
    %c0_i32 = arith.constant 0 : i32
    %c0_i32_0 = arith.constant 0 : i32
    return %arg0, %c0_i32, %arg1 : i32, i32, i32
  }
  func.func @transform_1(%arg0: i32, %arg1: i32) -> (i32, i32, i32) {
    %c0_i32 = arith.constant 0 : i32
    %c0_i32_0 = arith.constant 0 : i32
    return %arg0, %c0_i32, %arg1 : i32, i32, i32
  }
  func.func @transform_2(%arg0: i32, %arg1: i32) -> (i32, i32, i32) {
    %c0_i32 = arith.constant 0 : i32
    %c0_i32_0 = arith.constant 0 : i32
    return %arg0, %c0_i32, %arg1 : i32, i32, i32
  }
  func.func @transform_3(%arg0: i32, %arg1: i32) -> (i32, i32, i32, i32) {
    %c0_i32 = arith.constant 0 : i32
    %c0_i32_0 = arith.constant 0 : i32
    %c0_i32_1 = arith.constant 0 : i32
    return %arg0, %arg1, %c0_i32, %c0_i32_0 : i32, i32, i32, i32
  }
}

</mosaic_0001>

<llo_original>
// kernel: tpu_custom_call.1
$region0: #{tpu_custom_call.1}
  #allocation0 [shape = 'u32[]', space=smem, size = 0x4, offset = 0x4, fixed_abs, tag = 'smem constant byte address 0x4 - core index']
  #allocation1 [shape = 'u32[72,128]{1,0:T(1,128)}', space=vmem, size = 0x9000, scoped, tag = 'internal scratch']
  %s0 = inlined_call_operand.hbm [shape: f32[2,4,256], index: 0, kind: input, shape index: {}]
  %s1 = inlined_call_operand.hbm [shape: f32[2,4,256], index: 1, kind: input, shape index: {}]
  %s2 = inlined_call_operand.hbm [shape: f32[2,4,256], index: 2, kind: input, shape index: {}]
  %s3 = inlined_call_operand.hbm [shape: f32[2,1,8,128], index: 3, kind: output, shape index: {}]
  %s4 = sld [smem:[#allocation0]]
  $region57: #{tpu_custom_call.1} parent=0
    _
  %s6 = ssub.s32 1, %s4
  %s7 = scalar_select 0, %s6, %s4
  $region1: #{tpu_custom_call.1} parent=0
    #allocation2 [shape = 'u8[8192]{0}', space=vmem, size = 0x2000, scoped, tag = 'input window, operand 0']
    #allocation3 [shape = 's32[2]{0}', space=sflag, size = 0x8, scoped, tag = 'scoped memory for tpu_custom_call.1']
    #allocation4 [shape = 's32[2]{0}', space=sflag, size = 0x8, scoped, tag = 'scoped memory for tpu_custom_call.1']
    #allocation5 [shape = 'u8[8192]{0}', space=vmem, size = 0x2000, scoped, tag = 'input window, operand 1']
    #allocation6 [shape = 's32[2]{0}', space=sflag, size = 0x8, scoped, tag = 'scoped memory for tpu_custom_call.1']
    #allocation7 [shape = 'u8[8192]{0}', space=vmem, size = 0x2000, scoped, tag = 'input window, operand 2']
    #allocation8 [shape = 'u8[8192]{0}', space=vmem, size = 0x2000, scoped, tag = 'output window, operand 0']
    %8 = vsyncpa [#allocation3], 0
    %s9 = scalar_lea.sflag [#allocation3], 1
    %10 = vsyncpa %s9, 0
    %11 = vsyncpa [#allocation6], 0
    %s12 = scalar_lea.sflag [#allocation6], 1
    %13 = vsyncpa %s12, 0
    %14 = vsyncpa [#allocation4], 0
    %s15 = scalar_lea.sflag [#allocation4], 1
    %16 = vsyncpa %s15, 0
    loop: start=0, step=1, limit=4
    $region2: #{tpu_custom_call.1} parent=1 // loop_pre_header
      _
    $region3: #{tpu_custom_call.1} parent=1 // loop_header
      %s18 = sphi 0, %s22
      %p19 = scmp.ge.s32.totalorder %s18, 4
      %s25 = sphi 0, %s37
      %s26 = sphi 0, %s33
      %s27 = sphi 0, %s25
      %s28 = sphi 0, %s26
      %s29 = sphi 0, %s27
      %s30 = sphi 0, %s28
      %s42 = sphi 0, %s44
      %s45 = sphi 0, %s42
      %s46 = sphi 0, %s45
      %s62 = sphi 0, %s46
      %s70 = sphi 0, %s72
      %s73 = sphi 0, %s70
      %s74 = sphi 0, %s73
      %s90 = sphi 0, %s74
      %s98 = sphi 0, %s100
      %s101 = sphi 0, %s98
      %s102 = sphi 0, %s101
      %s118 = sphi 0, %s102
      %s126 = sphi 0, %s128
      %s129 = sphi 0, %s126
      %s130 = sphi 0, %s129
      %s146 = sphi 0, %s130
    $region4: #{tpu_custom_call.1} parent=1 // loop_header_branch
      %21 = sbr.rel (%p19) target = $region8
    $region5: #{tpu_custom_call.1} parent=1 // loop_body
      %s23 = ssub.s32 %s18, 1
      %s24 = ssub.s32 %s18, 2
      %s31 = sadd.s32 1, %s26
      %p32 = scmp.ge.s32.totalorder %s31, 1
      %s33 = scalar_select %p32, 0, %s31
      %s34 = sadd.s32 1, %s25
      %s35 = scalar_select %p32, %s34, %s25
      %p36 = scmp.ge.s32.totalorder %s35, 2
      %s37 = scalar_select %p36, 0, %s35
      %s38 = ssub.s32 %s25, %s37
      %s39 = ssub.s32 %s26, %s33
      %s40 = sor.u32 %s38, %s39
      %p41 = scmp.eq.s32.totalorder %s40, 0
      %s43 = sadd.s32 %s42, 1
      %s44 = scalar_select %p41, %s42, %s43
      %p47 = pneg %p41
      %p48 = scmp.eq.s32.totalorder %s18, 1
      %p49 = por %p47, %p48
      %p50 = scmp.ne.s32.totalorder %s42, %s45
      %p51 = scmp.eq.s32.totalorder %s18, 0
      %p52 = por %p50, %p51
      %p53 = scmp.ne.s32.totalorder %s42, %s45
      %p54 = scmp.eq.s32.totalorder %s23, 1
      %p55 = por %p53, %p54
      %p56 = scmp.ne.s32.totalorder %s45, %s46
      %p57 = scmp.eq.s32.totalorder %s23, 0
      %p58 = por %p56, %p57
      %p59 = scmp.ne.s32.totalorder %s45, %s46
      %p60 = scmp.eq.s32.totalorder %s24, 1
      %p61 = por %p59, %p60
      %p63 = scmp.ne.s32.totalorder %s46, %s62
      %p64 = scmp.eq.s32.totalorder %s24, 0
      %p65 = por %p63, %p64
      %s66 = ssub.s32 %s25, %s37
      %s67 = ssub.s32 %s26, %s33
      %s68 = sor.u32 %s66, %s67
      %p69 = scmp.eq.s32.totalorder %s68, 0
      %s71 = sadd.s32 %s70, 1
      %s72 = scalar_select %p69, %s70, %s71
      %p75 = pneg %p69
      %p76 = scmp.eq.s32.totalorder %s18, 1
      %p77 = por %p75, %p76
      %p78 = scmp.ne.s32.totalorder %s70, %s73
      %p79 = scmp.eq.s32.totalorder %s18, 0
      %p80 = por %p78, %p79
      %p81 = scmp.ne.s32.totalorder %s70, %s73
      %p82 = scmp.eq.s32.totalorder %s23, 1
      %p83 = por %p81, %p82
      %p84 = scmp.ne.s32.totalorder %s73, %s74
      %p85 = scmp.eq.s32.totalorder %s23, 0
      %p86 = por %p84, %p85
      %p87 = scmp.ne.s32.totalorder %s73, %s74
      %p88 = scmp.eq.s32.totalorder %s24, 1
      %p89 = por %p87, %p88
      %p91 = scmp.ne.s32.totalorder %s74, %s90
      %p92 = scmp.eq.s32.totalorder %s24, 0
      %p93 = por %p91, %p92
      %s94 = ssub.s32 %s25, %s37
      %s95 = ssub.s32 %s26, %s33
      %s96 = sor.u32 %s94, %s95
      %p97 = scmp.eq.s32.totalorder %s96, 0
      %s99 = sadd.s32 %s98, 1
      %s100 = scalar_select %p97, %s98, %s99
      %p103 = pneg %p97
      %p104 = scmp.eq.s32.totalorder %s18, 1
      %p105 = por %p103, %p104
      %p106 = scmp.ne.s32.totalorder %s98, %s101
      %p107 = scmp.eq.s32.totalorder %s18, 0
      %p108 = por %p106, %p107
      %p109 = scmp.ne.s32.totalorder %s98, %s101
      %p110 = scmp.eq.s32.totalorder %s23, 1
      %p111 = por %p109, %p110
      %p112 = scmp.ne.s32.totalorder %s101, %s102
      %p113 = scmp.eq.s32.totalorder %s23, 0
      %p114 = por %p112, %p113
      %p115 = scmp.ne.s32.totalorder %s101, %s102
      %p116 = scmp.eq.s32.totalorder %s24, 1
      %p117 = por %p115, %p116
      %p119 = scmp.ne.s32.totalorder %s102, %s118
      %p120 = scmp.eq.s32.totalorder %s24, 0
      %p121 = por %p119, %p120
      %s122 = ssub.s32 %s25, %s37
      %s123 = ssub.s32 %s26, %s33
      %s124 = sor.u32 %s122, %s123
      %p125 = scmp.eq.s32.totalorder %s124, 0
      %s127 = sadd.s32 %s126, 1
      %s128 = scalar_select %p125, %s126, %s127
      %p131 = pneg %p125
      %p132 = scmp.eq.s32.totalorder %s18, 1
      %p133 = por %p131, %p132
      %p134 = scmp.ne.s32.totalorder %s126, %s129
      %p135 = scmp.eq.s32.totalorder %s18, 0
      %p136 = por %p134, %p135
      %p137 = scmp.ne.s32.totalorder %s126, %s129
      %p138 = scmp.eq.s32.totalorder %s23, 1
      %p139 = por %p137, %p138
      %p140 = scmp.ne.s32.totalorder %s129, %s130
      %p141 = scmp.eq.s32.totalorder %s23, 0
      %p142 = por %p140, %p141
      %p143 = scmp.ne.s32.totalorder %s129, %s130
      %p144 = scmp.eq.s32.totalorder %s24, 1
      %p145 = por %p143, %p144
      %p147 = scmp.ne.s32.totalorder %s130, %s146
      %p148 = scmp.eq.s32.totalorder %s24, 0
      %p149 = por %p147, %p148
      %p150 = scmp.le.s32.totalorder 1, %s18
      %p151 = scmp.lt.s32.totalorder %s18, 3
      %p152 = pnand %p150, %p151
      %p153 = pneg %p152
      // Predicated region
      $region9: #{tpu_custom_call.1} parent=5 // pred_check
        _
      $region10: #{tpu_custom_call.1} parent=5 // pred_check_branch
        %155 = sbr.rel (%p152) target = $region12
      $region11: #{tpu_custom_call.1} parent=5 // pred_region
        %s156 = ssub.s32 %s18, 1
      $region12: #{tpu_custom_call.1} parent=5 // pred_fallthru
        _
      %p157 = scmp.lt.s32.totalorder %s18, 2
      // Predicated region
      $region13: #{tpu_custom_call.1} parent=5 // pred_check
        %p158 = pneg %p157
      $region14: #{tpu_custom_call.1} parent=5 // pred_check_branch
        %160 = sbr.rel (%p158) target = $region16
      $region15: #{tpu_custom_call.1} parent=5 // pred_region
        // Predicated region
        $region17: #{tpu_custom_call.1} parent=15 // pred_check
          %p161 = pneg %p52
        $region18: #{tpu_custom_call.1} parent=15 // pred_check_branch
          %163 = sbr.rel (%p161) target = $region20
        $region19: #{tpu_custom_call.1} parent=15 // pred_region
          %s164 = sand.u32 %s42, 1
          %s165 = scalar_lea.sflag [#allocation3], %s164
          %s166 = sand.u32 %s42, 1
          %s167 = smul.addr %s166, 8
          %s168 = scalar_lea.vmem [#allocation2], %s167
          %s169 = smul.u32 2, %s26
          %171 = vsyncadd %s165, 0
          %s172 = smul.addr %s25, 2
          %s173 = sadd.s32 %s169, %s172
          %s174 = smul.addr %s173, 4
          %s175 = scalar_lea.hbm %s0, %s174
          %s177 = sshll.u32 %s175, 4
          %s178 = int_to_ptr.hbm [resolvable:$true] %s177
          %s179 = sshll.u32 %s168, 4
          %s180 = int_to_ptr.vmem [resolvable:$true] %s179
          %182 = dma.hbm_to_vmem [thread:$0]  %s178, 128, %s180, %s165
        $region20: #{tpu_custom_call.1} parent=15 // pred_fallthru
          _
        // Predicated region
        $region21: #{tpu_custom_call.1} parent=15 // pred_check
          %p183 = pneg %p80
        $region22: #{tpu_custom_call.1} parent=15 // pred_check_branch
          %185 = sbr.rel (%p183) target = $region24
        $region23: #{tpu_custom_call.1} parent=15 // pred_region
          %s186 = sand.u32 %s18, 1
          %s187 = scalar_lea.sflag [#allocation6], %s186
          %s188 = sand.u32 %s70, 1
          %s189 = smul.addr %s188, 8
          %s190 = scalar_lea.vmem [#allocation5], %s189
          %s191 = smul.u32 2, %s26
          %193 = vsyncadd %s187, 0
          %s194 = smul.addr %s25, 2
          %s195 = sadd.s32 %s191, %s194
          %s196 = smul.addr %s195, 4
          %s197 = scalar_lea.hbm %s1, %s196
          %s199 = sshll.u32 %s197, 4
          %s200 = int_to_ptr.hbm [resolvable:$true] %s199
          %s201 = sshll.u32 %s190, 4
          %s202 = int_to_ptr.vmem [resolvable:$true] %s201
          %204 = dma.hbm_to_vmem [thread:$0]  %s200, 128, %s202, %s187
        $region24: #{tpu_custom_call.1} parent=15 // pred_fallthru
          _
        // Predicated region
        $region25: #{tpu_custom_call.1} parent=15 // pred_check
          %p205 = pneg %p108
        $region26: #{tpu_custom_call.1} parent=15 // pred_check_branch
          %207 = sbr.rel (%p205) target = $region28
        $region27: #{tpu_custom_call.1} parent=15 // pred_region
          %s208 = sand.u32 %s18, 1
          %s209 = scalar_lea.sflag [#allocation6], %s208
          %s210 = sand.u32 %s98, 1
          %s211 = smul.addr %s210, 8
          %s212 = scalar_lea.vmem [#allocation7], %s211
          %s213 = smul.u32 2, %s26
          %215 = vsyncadd %s209, 0
          %s216 = smul.addr %s25, 2
          %s217 = sadd.s32 %s213, %s216
          %s218 = smul.addr %s217, 4
          %s219 = scalar_lea.hbm %s2, %s218
          %s221 = sshll.u32 %s219, 4
          %s222 = int_to_ptr.hbm [resolvable:$true] %s221
          %s223 = sshll.u32 %s212, 4
          %s224 = int_to_ptr.vmem [resolvable:$true] %s223
          %226 = dma.hbm_to_vmem [thread:$0]  %s222, 128, %s224, %s209
        $region28: #{tpu_custom_call.1} parent=15 // pred_fallthru
          _
      $region16: #{tpu_custom_call.1} parent=5 // pred_fallthru
        _
      %p227 = scmp.le.s32.totalorder 1, %s18
      %p228 = scmp.lt.s32.totalorder %s18, 3
      %p229 = pnand %p227, %p228
      %p230 = pneg %p229
      // Predicated region
      $region29: #{tpu_custom_call.1} parent=5 // pred_check
        _
      $region30: #{tpu_custom_call.1} parent=5 // pred_check_branch
        %232 = sbr.rel (%p229) target = $region32
      $region31: #{tpu_custom_call.1} parent=5 // pred_region
        %s233 = ssub.s32 %s18, 1
        %s234 = sand.u32 %s45, 1
        %s235 = scalar_lea.sflag [#allocation3], %s234
        %s236 = sand.u32 %s45, 1
        %s237 = smul.addr %s236, 8
        %s238 = scalar_lea.vmem [#allocation2], %s237
        // Predicated region
        $region33: #{tpu_custom_call.1} parent=31 // pred_check
          %p239 = pneg %p58
        $region34: #{tpu_custom_call.1} parent=31 // pred_check_branch
          %241 = sbr.rel (%p239) target = $region36
        $region35: #{tpu_custom_call.1} parent=31 // pred_region
          %243 = dma.done %s235, 128
        $region36: #{tpu_custom_call.1} parent=31 // pred_fallthru
          _
        %s244 = sand.u32 %s23, 1
        %s245 = scalar_lea.sflag [#allocation6], %s244
        %s246 = sand.u32 %s73, 1
        %s247 = smul.addr %s246, 8
        %s248 = scalar_lea.vmem [#allocation5], %s247
        // Predicated region
        $region37: #{tpu_custom_call.1} parent=31 // pred_check
          %p249 = pneg %p86
        $region38: #{tpu_custom_call.1} parent=31 // pred_check_branch
          %251 = sbr.rel (%p249) target = $region40
        $region39: #{tpu_custom_call.1} parent=31 // pred_region
          %253 = dma.done %s245, 128
        $region40: #{tpu_custom_call.1} parent=31 // pred_fallthru
          _
        %s254 = sand.u32 %s23, 1
        %s255 = scalar_lea.sflag [#allocation6], %s254
        %s256 = sand.u32 %s101, 1
        %s257 = smul.addr %s256, 8
        %s258 = scalar_lea.vmem [#allocation7], %s257
        // Predicated region
        $region41: #{tpu_custom_call.1} parent=31 // pred_check
          %p259 = pneg %p114
        $region42: #{tpu_custom_call.1} parent=31 // pred_check_branch
          %261 = sbr.rel (%p259) target = $region44
        $region43: #{tpu_custom_call.1} parent=31 // pred_region
          %263 = dma.done %s255, 128
        $region44: #{tpu_custom_call.1} parent=31 // pred_fallthru
          _
        %s264 = sand.u32 %s45, 1
        %s265 = scalar_lea.sflag [#allocation3], %s264
        %s266 = sand.u32 %s45, 1
        %s267 = smul.addr %s266, 8
        %s268 = scalar_lea.vmem [#allocation2], %s267
        %p269 = pneg %p58
        %p270 = pneg %p55
        %s271 = sand.u32 %s23, 1
        %s272 = scalar_lea.sflag [#allocation6], %s271
        %s273 = sand.u32 %s73, 1
        %s274 = smul.addr %s273, 8
        %s275 = scalar_lea.vmem [#allocation5], %s274
        %p276 = pneg %p86
        %p277 = pneg %p83
        %s278 = sand.u32 %s23, 1
        %s279 = scalar_lea.sflag [#allocation6], %s278
        %s280 = sand.u32 %s101, 1
        %s281 = smul.addr %s280, 8
        %s282 = scalar_lea.vmem [#allocation7], %s281
        %p283 = pneg %p114
        %p284 = pneg %p111
        %p285 = pneg %p142
        %p286 = pneg %p139
        %s287 = sand.u32 %s129, 1
        %s288 = scalar_lea.sflag [#allocation4], %s287
        %s289 = sand.u32 %s129, 1
        %s290 = smul.addr %s289, 8
        %s291 = scalar_lea.vmem [#allocation8], %s290
        %s292 = smul.u32 2, %s28
        %s293 = smul.u32 2, %s28
        %s294 = smul.u32 2, %s28
        %v295 = vld [vmem:[%s238] sm:$0xff]
        %v296 = vld [vmem:[%s248] sm:$0xff]
        %v297 = vld [vmem:[%s258] sm:$0xff]
        %299 = vst [vmem:[#allocation1] ss:$2 sm:$0xff] %v295
        %v300 = vld.sshfl [vmem:[#allocation1] sm:$0xff pattern:$0x75316420]
        %v301 = vld.sshfl [vmem:[#allocation1 + $0x8] sm:$0xff pattern:$0x75316420]
        %vm304 = vcmask 1043456
        %v305 = vsel %vm304, %v300, -inf
        %v306 = vrot.slane %v305, 4
        %v307 = vmax.f32 %v305, %v306
        %v308 = vrot.slane %v307, 2
        %v309 = vmax.f32 %v307, %v308
        %v310 = vrot.slane %v309, 1
        %v311 = vmax.f32 %v309, %v310
        %v312 = vsel %vm304, %v301, -inf
        %v313 = vrot.slane %v312, 4
        %v314 = vmax.f32 %v312, %v313
        %v315 = vrot.slane %v314, 2
        %v316 = vmax.f32 %v314, %v315
        %v317 = vrot.slane %v316, 1
        %v318 = vmax.f32 %v316, %v317
        %v321 = vrot.slane %v318, 4
        %v322 = vsel %vm304, %v311, %v321
        %v324 = vsub.f32 %v295, %v322
        %v325 = vmul.f32 %v324, 1.442695
        %v326 = vpow.pop %v325
        %328 = vst [vmem:[#allocation1] ss:$2 sm:$0xff] %v326
        %v329 = vld.sshfl [vmem:[#allocation1] sm:$0xff pattern:$0x75316420]
        %v330 = vld.sshfl [vmem:[#allocation1 + $0x8] sm:$0xff pattern:$0x75316420]
        %v333 = vsel %vm304, %v329, 0.0
        %v334 = vrot.slane %v333, 4
        %v335 = vadd.f32 %v333, %v334
        %v336 = vrot.slane %v335, 2
        %v337 = vadd.f32 %v335, %v336
        %v338 = vrot.slane %v337, 1
        %v339 = vadd.f32 %v337, %v338
        %v340 = vsel %vm304, %v330, 0.0
        %v341 = vrot.slane %v340, 4
        %v342 = vadd.f32 %v340, %v341
        %v343 = vrot.slane %v342, 2
        %v344 = vadd.f32 %v342, %v343
        %v345 = vrot.slane %v344, 1
        %v346 = vadd.f32 %v344, %v345
        %v347 = vrcp.pop %v339
        %v348 = vmul.f32 %v339, %v347
        %v349 = vsub.f32 1.0, %v348
        %v350 = vmul.f32 %v347, %v349
        %v351 = vadd.f32 %v347, %v350
        %vm352 = vweird.f32 %v339
        %vm353 = vweird.f32 %v347
        %vm354 = vmor %vm352, %vm353
        %v355 = vsel %vm354, %v347, %v351
        %v356 = vand.u32 2147483647, %v339
        %vm357 = vcmp.eq.f32.partialorder %v356, 8.507059e+37
        %v358 = vand.u32 %v339, 2147483648
        %v359 = vor.u32 1.1754944e-38, %v358
        %v360 = vsel %vm357, %v359, %v355
        %v361 = vrcp.pop %v346
        %v362 = vmul.f32 %v346, %v361
        %v363 = vsub.f32 1.0, %v362
        %v364 = vmul.f32 %v361, %v363
        %v365 = vadd.f32 %v361, %v364
        %vm366 = vweird.f32 %v346
        %vm367 = vweird.f32 %v361
        %vm368 = vmor %vm366, %vm367
        %v369 = vsel %vm368, %v361, %v365
        %v370 = vand.u32 2147483647, %v346
        %vm371 = vcmp.eq.f32.partialorder %v370, 8.507059e+37
        %v372 = vand.u32 %v346, 2147483648
        %v373 = vor.u32 1.1754944e-38, %v372
        %v374 = vsel %vm371, %v373, %v369
        %v375 = vlog2.pop %v339
        %v376 = vmul.f32 %v375, 0.6931472
        %v377 = vlog2.pop %v346
        %v378 = vmul.f32 %v377, 0.6931472
        %v381 = vrot.slane %v378, 4
        %v382 = vsel %vm304, %v376, %v381
        %v384 = vsub.f32 %v324, %v382
        %v387 = vrot.slane %v374, 4
        %v388 = vsel %vm304, %v360, %v387
        %v390 = vmul.f32 %v326, %v388
        %v391 = vsub.f32 1.0, %v390
        %v392 = vmul.f32 %v391, %v391
        %v393 = vmul.f32 %v297, %v392
        %v394 = vmul.f32 %v393, %v384
        %v395 = vmul.f32 %v394, %v296
        %397 = vst [vmem:[#allocation1] ss:$2 sm:$0xff] %v395
        %v398 = vld.sshfl [vmem:[#allocation1] sm:$0xff pattern:$0x75316420]
        %v399 = vld.sshfl [vmem:[#allocation1 + $0x8] sm:$0xff pattern:$0x75316420]
        %v402 = vsel %vm304, %v398, 0.0
        %v403 = vrot.slane %v402, 4
        %v404 = vadd.f32 %v402, %v403
        %v405 = vrot.slane %v404, 2
        %v406 = vadd.f32 %v404, %v405
        %v407 = vrot.slane %v406, 1
        %v408 = vadd.f32 %v406, %v407
        %v409 = vsel %vm304, %v399, 0.0
        %v410 = vrot.slane %v409, 4
        %v411 = vadd.f32 %v409, %v410
        %v412 = vrot.slane %v411, 2
        %v413 = vadd.f32 %v411, %v412
        %v414 = vrot.slane %v413, 1
        %v415 = vadd.f32 %v413, %v414
        %vm416 = vcmask 1040384
        %v417 = vsel %vm416, %v408, 0.0
        %v418 = vsel %vm416, %v415, 0.0
        %v419 = vadd.f32 %v417, %v418
        %420 = vadd.xlane.f32.xlu0 %v419
        %v421 = vpop.xlane.xlu0 %420
        %v422 = vrot.slane %v421, 4
        %v423 = vadd.f32 %v421, %v422
        %v424 = vrot.slane %v423, 2
        %v425 = vadd.f32 %v423, %v424
        %v426 = vrot.slane %v425, 1
        %v427 = vadd.f32 %v425, %v426
        %s428 = vtos %v427
        %v429 = vstv %s428
        %430 = vst [vmem:[%s291] sm:$0xff] %v429
        %s431 = sand.u32 %s129, 1
        %s432 = scalar_lea.sflag [#allocation4], %s431
        %s433 = sand.u32 %s129, 1
        %s434 = smul.addr %s433, 8
        %s435 = scalar_lea.vmem [#allocation8], %s434
        // Predicated region
        $region45: #{tpu_custom_call.1} parent=31 // pred_check
          %p436 = pneg %p139
        $region46: #{tpu_custom_call.1} parent=31 // pred_check_branch
          %438 = sbr.rel (%p436) target = $region48
        $region47: #{tpu_custom_call.1} parent=31 // pred_region
          %440 = vsyncadd %s432, 0
          %s441 = sadd.s32 %s28, %s27
          %s442 = smul.addr %s441, 8
          %s443 = scalar_lea.hbm %s3, %s442
          %s445 = sshll.u32 %s435, 4
          %s446 = int_to_ptr.vmem [resolvable:$true] %s445
          %s447 = sshll.u32 %s443, 4
          %s448 = int_to_ptr.hbm [resolvable:$true] %s447
          %450 = dma.vmem_to_hbm [thread:$0]  %s446, 128, %s448, %s432
        $region48: #{tpu_custom_call.1} parent=31 // pred_fallthru
          _
      $region32: #{tpu_custom_call.1} parent=5 // pred_fallthru
        _
      %p451 = scmp.le.s32.totalorder 2, %s18
      // Predicated region
      $region49: #{tpu_custom_call.1} parent=5 // pred_check
        %p452 = pneg %p451
      $region50: #{tpu_custom_call.1} parent=5 // pred_check_branch
        %454 = sbr.rel (%p452) target = $region52
      $region51: #{tpu_custom_call.1} parent=5 // pred_region
        %s455 = ssub.s32 %s18, 2
        // Predicated region
        $region53: #{tpu_custom_call.1} parent=51 // pred_check
          %p456 = pneg %p145
        $region54: #{tpu_custom_call.1} parent=51 // pred_check_branch
          %458 = sbr.rel (%p456) target = $region56
        $region55: #{tpu_custom_call.1} parent=51 // pred_region
          %s459 = sand.u32 %s130, 1
          %s460 = scalar_lea.sflag [#allocation4], %s459
          %s461 = sand.u32 %s130, 1
          %s462 = smul.addr %s461, 8
          %s463 = scalar_lea.vmem [#allocation8], %s462
          %465 = dma.done %s460, 128
        $region56: #{tpu_custom_call.1} parent=51 // pred_fallthru
          _
      $region52: #{tpu_custom_call.1} parent=5 // pred_fallthru
        _
    $region6: #{tpu_custom_call.1} parent=1 // loop_footer
      %s22 = sadd.s32 1, %s18
    $region7: #{tpu_custom_call.1} parent=1 // loop_footer_branch
      %17 = sbr.rel target = $region3
    $region8: #{tpu_custom_call.1} parent=1 // loop_exit
      _
    %466 = vsyncpa [#allocation3], 1
    %s467 = scalar_lea.sflag [#allocation3], 1
    %468 = vsyncpa %s467, 1
    %469 = vsyncpa [#allocation6], 1
    %s470 = scalar_lea.sflag [#allocation6], 1
    %471 = vsyncpa %s470, 1
    %472 = vsyncpa [#allocation4], 1
    %s473 = scalar_lea.sflag [#allocation4], 1
    %474 = vsyncpa %s473, 1

</llo_original>
